<compile_context>
chip_gen: v6e
topology: v6e:2x2x1
jax: 0.10.0
libtpu: 0.0.40
codegen_flags: <defaults>
</compile_context>

<pallas_src>
import functools

import jax
import jax.numpy as jnp
from jax import lax
from jax.experimental import pallas as pl
from jax.experimental.pallas import tpu as pltpu


def _round_up(x, m):
    return ((x + m - 1) // m) * m


def _vmem_capacity_bytes():
    # Physical VMEM per TensorCore; fall back to the smallest generation (v7x).
    try:
        return int(pltpu.get_tpu_info().vmem_capacity_bytes)
    except Exception:  # pragma: no cover - trace-time query not available
        return 64 << 20


def _infonce_kernel(m_ref, c_ref, loss_ref, *, inv_temp, batch, bf16_matmul):
    # Load full (padded) tiles; all math in f32.
    m = m_ref[...].astype(jnp.float32)
    c = c_ref[...].astype(jnp.float32)

    # F.normalize(p=2, dim=1): x / max(||x||, 1e-12) == x * rsqrt(max(||x||^2, 1e-24))
    eps2 = 1e-24
    m_scale = lax.rsqrt(jnp.maximum(jnp.sum(m * m, axis=1, keepdims=True), eps2))
    c_scale = lax.rsqrt(jnp.maximum(jnp.sum(c * c, axis=1, keepdims=True), eps2))

    if bf16_matmul:
        # Keep temperature in f32: scale the f32 logits after the dot.
        m_norm = m * m_scale
        c_norm = c * c_scale
        lhs = m_norm.astype(jnp.bfloat16)
        rhs = c_norm.astype(jnp.bfloat16)
    else:
        # Fold 1/temperature into the melody operand (one multiply on a BxD tile
        # that is already being touched) -> no bp x bp scaling pass.
        m_norm = m * (m_scale * inv_temp)
        c_norm = c * c_scale
        lhs, rhs = m_norm, c_norm

    # logits[i, j] = <m_norm[i], c_norm[j]> -- contract both operands on dim 1.
    logits = lax.dot_general(
        lhs,
        rhs,
        dimension_numbers=(((1,), (1,)), ((), ())),
        preferred_element_type=jnp.float32,
    )

    bp = logits.shape[0]
    inv_b = 1.0 / float(batch)

    # Sum of the positive (diagonal) logits; padded rows are exact zeros.
    diag_sum = jnp.sum(m_norm * c_norm)
    if bf16_matmul:
        logits = logits * inv_temp
        diag_sum = diag_sum * inv_temp

    if batch != bp:
        # 1-D validity vectors + additive -1e30 bias (no bp x bp iota/where).
        row_ids = lax.broadcasted_iota(jnp.int32, (bp, 1), 0)
        col_ids = lax.broadcasted_iota(jnp.int32, (1, bp), 1)
        row_valid = (row_ids < batch).astype(jnp.float32)   # (bp, 1)
        col_valid = (col_ids < batch).astype(jnp.float32)   # (1, bp)
        neg = jnp.float32(-1e30)
        logits = logits + (1.0 - row_valid) * neg + (1.0 - col_valid) * neg
    else:
        row_valid = None
        col_valid = None

    # Single shared-global-max exp pass; one bp x bp transcendental sweep.
    gmax = jnp.max(logits)
    e = jnp.exp(logits - gmax)
    tiny = jnp.float32(1e-30)  # guards log(0) on fully-padded rows/cols
    row_lse = gmax + jnp.log(jnp.maximum(jnp.sum(e, axis=1, keepdims=True), tiny))
    col_lse = gmax + jnp.log(jnp.maximum(jnp.sum(e, axis=0, keepdims=True), tiny))
    if row_valid is not None:
        row_lse = row_lse * row_valid
        col_lse = col_lse * col_valid

    # CE(logits, labels) and CE(logits.T, labels): mean_i [lse_i - logits[i, i]].
    loss_melody = (jnp.sum(row_lse) - diag_sum) * inv_b
    loss_chord = (jnp.sum(col_lse) - diag_sum) * inv_b
    loss_ref[0, 0] = (loss_melody + loss_chord) * 0.5


def infonce_loss(melody_embeds, chord_embeds, temperature=0.07):
    """InfoNCE loss; melody_embeds, chord_embeds are [batch, embed_dim]."""
    assert melody_embeds.shape == chord_embeds.shape
    b, d = melody_embeds.shape

    # Lane-dense padding. Zeros don't change norms or dot products.
    bp = _round_up(b, 128) if b > 16 else _round_up(b, 8)
    dp = _round_up(d, 128)
    if (bp, dp) != (b, d):
        pad = ((0, bp - b), (0, dp - d))
        melody_embeds = jnp.pad(melody_embeds, pad)
        chord_embeds = jnp.pad(chord_embeds, pad)

    # bf16 MXU operands only in the MXU-bound regime.
    bf16_matmul = bp >= 512

    kernel = functools.partial(
        _infonce_kernel,
        inv_temp=1.0 / float(temperature),
        batch=b,
        bf16_matmul=bf16_matmul,
    )

    # VMEM budget: padded inputs + f32 working copies + logits + exp temporary
    # + slack for live intermediates; clamp to physical VMEM minus headroom.
    itemsize = melody_embeds.dtype.itemsize
    in_bytes = 2 * bp * dp * itemsize
    work_bytes = 4 * (2 * bp * dp + 4 * bp * bp)
    needed = in_bytes + work_bytes + (2 << 20)
    cap = _vmem_capacity_bytes()
    vmem_limit = max(16 << 20, min(needed, cap - (16 << 20)))

    cost = pl.CostEstimate(
        flops=2 * bp * bp * dp + 8 * bp * dp,
        transcendentals=bp * bp + 2 * bp,
        bytes_accessed=in_bytes + 4,
    )

    out = pl.pallas_call(
        kernel,
        out_shape=jax.ShapeDtypeStruct((1, 1), jnp.float32),
        in_specs=[
            pl.BlockSpec(memory_space=pltpu.MemorySpace.VMEM),
            pl.BlockSpec(memory_space=pltpu.MemorySpace.VMEM),
        ],
        out_specs=pl.BlockSpec(memory_space=pltpu.MemorySpace.SMEM),
        compiler_params=pltpu.CompilerParams(vmem_limit_bytes=vmem_limit),
        cost_estimate=cost,
    )(melody_embeds, chord_embeds)
    return out[0, 0]


def _reference_infonce(melody, chord, temperature=0.07):
    m = melody / jnp.maximum(jnp.linalg.norm(melody, axis=1, keepdims=True), 1e-12)
    c = chord / jnp.maximum(jnp.linalg.norm(chord, axis=1, keepdims=True), 1e-12)
    logits = (m @ c.T) / temperature
    bsz = logits.shape[0]
    labels = jnp.arange(bsz)
    lm = -jnp.mean(jax.nn.log_softmax(logits, axis=1)[labels, labels])
    lc = -jnp.mean(jax.nn.log_softmax(logits.T, axis=1)[labels, labels])
    return (lm + lc) / 2


if __name__ == "__main__":
    key = jax.random.PRNGKey(0)
    k1, k2 = jax.random.split(key)
    batch, embed_dim = 8, 32
    melody_embeds = jax.random.normal(k1, (batch, embed_dim), dtype=jnp.float32)
    chord_embeds = jax.random.normal(k2, (batch, embed_dim), dtype=jnp.float32)

    loss = infonce_loss(melody_embeds, chord_embeds, temperature=0.07)
    jax.block_until_ready(loss)
    ref = _reference_infonce(melody_embeds, chord_embeds, temperature=0.07)
    assert jnp.allclose(loss, ref, atol=1e-4, rtol=1e-4), (loss, ref)

    # Small-batch padding / masking path (batch not a multiple of 8).
    m2 = jax.random.normal(jax.random.PRNGKey(3), (5, 48), dtype=jnp.float32)
    c2 = jax.random.normal(jax.random.PRNGKey(4), (5, 48), dtype=jnp.float32)
    loss2 = infonce_loss(m2, c2, temperature=0.07)
    jax.block_until_ready(loss2)
    ref2 = _reference_infonce(m2, c2, temperature=0.07)
    assert jnp.allclose(loss2, ref2, atol=1e-4, rtol=1e-4), (loss2, ref2)

    # Lane-dense 128-padding path (batch > 16, heavily padded bp x bp tile).
    m3 = jax.random.normal(jax.random.PRNGKey(5), (20, 40), dtype=jnp.float32)
    c3 = jax.random.normal(jax.random.PRNGKey(6), (20, 40), dtype=jnp.float32)
    loss3 = infonce_loss(m3, c3, temperature=0.07)
    jax.block_until_ready(loss3)
    ref3 = _reference_infonce(m3, c3, temperature=0.07)
    assert jnp.allclose(loss3, ref3, atol=1e-4, rtol=1e-4), (loss3, ref3)

    print("KERNEL_OK")
</pallas_src>

<mosaic_0001>
module attributes {stable_mosaic.version = 11 : i64} {
  func.func @_infonce_kernel(%arg0: memref<8x128xf32, #tpu.memory_space<vmem>>, %arg1: memref<8x128xf32, #tpu.memory_space<vmem>>, %arg2: memref<1x1xf32, #tpu.memory_space<smem>>) attributes {dimension_semantics = [], scalar_prefetch = 0 : i64, scratch_operands = 0 : i64, tpu.core_type = #tpu.core_type<tc>} {
    %c0 = arith.constant 0 : index
    %c0_0 = arith.constant 0 : index
    %0 = vector.load %arg0[%c0, %c0_0] : memref<8x128xf32, #tpu.memory_space<vmem>>, vector<8x128xf32>
    %c0_1 = arith.constant 0 : index
    %c0_2 = arith.constant 0 : index
    %1 = vector.load %arg1[%c0_1, %c0_2] : memref<8x128xf32, #tpu.memory_space<vmem>>, vector<8x128xf32>
    %2 = arith.mulf %0, %0 : vector<8x128xf32>
    %cst = arith.constant dense<0.000000e+00> : vector<8xf32>
    %3 = vector.multi_reduction <add>, %2, %cst [1] : vector<8x128xf32> to vector<8xf32>
    %4 = vector.shape_cast %3 : vector<8xf32> to vector<8x1xf32>
    %cst_3 = arith.constant 1.000000e-24 : f32
    %5 = vector.broadcast %cst_3 : f32 to vector<8x1xf32>
    %6 = arith.maximumf %4, %5 : vector<8x1xf32>
    %7 = math.rsqrt %6 : vector<8x1xf32>
    %8 = arith.mulf %1, %1 : vector<8x128xf32>
    %cst_4 = arith.constant dense<0.000000e+00> : vector<8xf32>
    %9 = vector.multi_reduction <add>, %8, %cst_4 [1] : vector<8x128xf32> to vector<8xf32>
    %10 = vector.shape_cast %9 : vector<8xf32> to vector<8x1xf32>
    %cst_5 = arith.constant 1.000000e-24 : f32
    %11 = vector.broadcast %cst_5 : f32 to vector<8x1xf32>
    %12 = arith.maximumf %10, %11 : vector<8x1xf32>
    %13 = math.rsqrt %12 : vector<8x1xf32>
    %cst_6 = arith.constant 14.2857141 : f32
    %14 = vector.broadcast %cst_6 : f32 to vector<8x1xf32>
    %15 = arith.mulf %7, %14 : vector<8x1xf32>
    %16 = vector.broadcast %15 : vector<8x1xf32> to vector<8x128xf32>
    %17 = arith.mulf %0, %16 : vector<8x128xf32>
    %18 = vector.broadcast %13 : vector<8x1xf32> to vector<8x128xf32>
    %19 = arith.mulf %1, %18 : vector<8x128xf32>
    %cst_7 = arith.constant dense<0.000000e+00> : vector<8x8xf32>
    %20 = tpu.matmul %17, %19, %cst_7 {dimension_numbers = #tpu.dot_dimension_numbers<[1], [1], [0], [0], [0, 0, 1, 0], [], []>} : vector<8x128xf32>, vector<8x128xf32>, vector<8x8xf32> -> vector<8x8xf32>
    %21 = arith.mulf %17, %19 : vector<8x128xf32>
    %22 = vector.shape_cast %21 : vector<8x128xf32> to vector<1x8x128xf32>
    %cst_8 = arith.constant dense<0.000000e+00> : vector<1xf32>
    %23 = vector.multi_reduction <add>, %22, %cst_8 [1, 2] : vector<1x8x128xf32> to vector<1xf32>
    %24 = vector.shape_cast %23 : vector<1xf32> to vector<1x1x1xf32>
    %25 = vector.extract %24[0, 0, 0] : f32 from vector<1x1x1xf32>
    %26 = vector.shape_cast %20 : vector<8x8xf32> to vector<1x8x8xf32>
    %cst_9 = arith.constant dense<0xFF800000> : vector<1xf32>
    %27 = vector.multi_reduction <maximumf>, %26, %cst_9 [1, 2] : vector<1x8x8xf32> to vector<1xf32>
    %28 = vector.shape_cast %27 : vector<1xf32> to vector<1x1x1xf32>
    %29 = vector.extract %28[0, 0, 0] : f32 from vector<1x1x1xf32>
    %30 = vector.broadcast %29 : f32 to vector<8x8xf32>
    %31 = arith.subf %20, %30 : vector<8x8xf32>
    %32 = math.exp %31 : vector<8x8xf32>
    %cst_10 = arith.constant dense<0.000000e+00> : vector<8xf32>
    %33 = vector.multi_reduction <add>, %32, %cst_10 [1] : vector<8x8xf32> to vector<8xf32>
    %34 = vector.shape_cast %33 : vector<8xf32> to vector<8x1xf32>
    %cst_11 = arith.constant 1.000000e-30 : f32
    %35 = vector.broadcast %cst_11 : f32 to vector<8x1xf32>
    %36 = arith.maximumf %34, %35 : vector<8x1xf32>
    %37 = math.log %36 : vector<8x1xf32>
    %38 = vector.broadcast %29 : f32 to vector<8x1xf32>
    %39 = arith.addf %38, %37 : vector<8x1xf32>
    %cst_12 = arith.constant dense<0.000000e+00> : vector<8xf32>
    %40 = vector.multi_reduction <add>, %32, %cst_12 [0] : vector<8x8xf32> to vector<8xf32>
    %41 = vector.shape_cast %40 : vector<8xf32> to vector<1x8xf32>
    %cst_13 = arith.constant 1.000000e-30 : f32
    %42 = vector.broadcast %cst_13 : f32 to vector<1x8xf32>
    %43 = arith.maximumf %41, %42 : vector<1x8xf32>
    %44 = math.log %43 : vector<1x8xf32>
    %45 = vector.broadcast %29 : f32 to vector<1x8xf32>
    %46 = arith.addf %45, %44 : vector<1x8xf32>
    %47 = vector.shape_cast %39 : vector<8x1xf32> to vector<1x8x1xf32>
    %cst_14 = arith.constant dense<0.000000e+00> : vector<1xf32>
    %48 = vector.multi_reduction <add>, %47, %cst_14 [1, 2] : vector<1x8x1xf32> to vector<1xf32>
    %49 = vector.shape_cast %48 : vector<1xf32> to vector<1x1x1xf32>
    %50 = vector.extract %49[0, 0, 0] : f32 from vector<1x1x1xf32>
    %51 = arith.subf %50, %25 : f32
    %cst_15 = arith.constant 1.250000e-01 : f32
    %52 = arith.mulf %51, %cst_15 : f32
    %53 = vector.shape_cast %46 : vector<1x8xf32> to vector<1x1x8xf32>
    %cst_16 = arith.constant dense<0.000000e+00> : vector<1xf32>
    %54 = vector.multi_reduction <add>, %53, %cst_16 [1, 2] : vector<1x1x8xf32> to vector<1xf32>
    %55 = vector.shape_cast %54 : vector<1xf32> to vector<1x1x1xf32>
    %56 = vector.extract %55[0, 0, 0] : f32 from vector<1x1x1xf32>
    %57 = arith.subf %56, %25 : f32
    %cst_17 = arith.constant 1.250000e-01 : f32
    %58 = arith.mulf %57, %cst_17 : f32
    %59 = arith.addf %52, %58 : f32
    %cst_18 = arith.constant 5.000000e-01 : f32
    %60 = arith.mulf %59, %cst_18 : f32
    %c0_19 = arith.constant 0 : index
    %c0_20 = arith.constant 0 : index
    %61 = memref.load %arg2[%c0_19, %c0_20] : memref<1x1xf32, #tpu.memory_space<smem>>
    memref.store %60, %arg2[%c0_19, %c0_20] : memref<1x1xf32, #tpu.memory_space<smem>>
    return
  }
}

</mosaic_0001>

<llo_original>
// kernel: tpu_custom_call.1
$region0: #{tpu_custom_call.1}
  #allocation0 [shape = 'u32[]', space=smem, size = 0x4, offset = 0x4, fixed_abs, tag = 'smem constant byte address 0x4 - core index']
  #allocation1 [shape = 'u32[144,128]{1,0:T(1,128)}', space=vmem, size = 0x12000, scoped, tag = 'internal scratch']
  %s0 = inlined_call_operand.hbm [shape: f32[8,128], index: 0, kind: input, shape index: {}]
  %s1 = inlined_call_operand.hbm [shape: f32[8,128], index: 1, kind: input, shape index: {}]
  %s2 = inlined_call_operand.hbm [shape: f32[1,1], index: 2, kind: output, shape index: {}]
  %s3 = sld [smem:[#allocation0]]
  $region26: #{tpu_custom_call.1} parent=0
    _
  %s5 = ssub.s32 1, %s3
  %s6 = scalar_select 0, %s5, %s3
  $region1: #{tpu_custom_call.1} parent=0
    #allocation2 [shape = 'u8[4096]{0}', space=vmem, size = 0x1000, scoped, tag = 'input window, operand 0, single buffered']
    #allocation3 [shape = 's32[1]{0}', space=sflag, size = 0x4, scoped, tag = 'scoped memory for tpu_custom_call.1']
    #allocation4 [shape = 's32[1]{0}', space=sflag, size = 0x4, scoped, tag = 'scoped memory for tpu_custom_call.1']
    #allocation5 [shape = 'u8[4096]{0}', space=vmem, size = 0x1000, scoped, tag = 'input window, operand 1, single buffered']
    #allocation6 [shape = 's32[1]{0}', space=sflag, size = 0x4, scoped, tag = 'scoped memory for tpu_custom_call.1']
    #allocation7 [shape = 'u8[512]{0}', space=smem, size = 0x200, scoped, tag = 'output window, operand 0, single buffered']
    %7 = vsyncpa [#allocation3], 0
    %8 = vsyncpa [#allocation6], 0
    %9 = vsyncpa [#allocation4], 0
    // Predicated region
    $region2: #{tpu_custom_call.1} parent=1 // pred_check
      _
    $region3: #{tpu_custom_call.1} parent=1 // pred_check_branch
      %11 = sbr.rel (0) target = $region5
    $region4: #{tpu_custom_call.1} parent=1 // pred_region
      %s13 = ssub.s32 128, 128
      %14 = vsyncadd [#allocation3], %s13
      %s16 = sshll.u32 [#allocation2], 4
      %s17 = int_to_ptr.vmem [resolvable:$true] %s16
      %19 = dma.hbm_to_vmem [thread:$0]  %s0, 128, %s17, [#allocation3]
    $region5: #{tpu_custom_call.1} parent=1 // pred_fallthru
      _
    // Predicated region
    $region6: #{tpu_custom_call.1} parent=1 // pred_check
      _
    $region7: #{tpu_custom_call.1} parent=1 // pred_check_branch
      %21 = sbr.rel (0) target = $region9
    $region8: #{tpu_custom_call.1} parent=1 // pred_region
      %s23 = ssub.s32 128, 128
      %24 = vsyncadd [#allocation6], %s23
      %s26 = sshll.u32 [#allocation5], 4
      %s27 = int_to_ptr.vmem [resolvable:$true] %s26
      %29 = dma.hbm_to_vmem [thread:$0]  %s1, 128, %s27, [#allocation6]
    $region9: #{tpu_custom_call.1} parent=1 // pred_fallthru
      _
    // Predicated region
    $region10: #{tpu_custom_call.1} parent=1 // pred_check
      _
    $region11: #{tpu_custom_call.1} parent=1 // pred_check_branch
      %31 = sbr.rel (0) target = $region13
    $region12: #{tpu_custom_call.1} parent=1 // pred_region
      %32 = dma.done [#allocation3], 128
    $region13: #{tpu_custom_call.1} parent=1 // pred_fallthru
      _
    // Predicated region
    $region14: #{tpu_custom_call.1} parent=1 // pred_check
      _
    $region15: #{tpu_custom_call.1} parent=1 // pred_check_branch
      %34 = sbr.rel (0) target = $region17
    $region16: #{tpu_custom_call.1} parent=1 // pred_region
      %35 = dma.done [#allocation6], 128
    $region17: #{tpu_custom_call.1} parent=1 // pred_fallthru
      _
    %v36 = vld [vmem:[#allocation2] sm:$0xff]
    %v37 = vld [vmem:[#allocation5] sm:$0xff]
    %v38 = vmul.f32 %v36, %v36
    %39 = vadd.xlane.f32.xlu0 %v38
    %v40 = vpop.xlane.xlu0 %39
    %v41 = vmax.f32 %v40, 1e-24
    %v42 = vrsqrt.pop %v41
    %v43 = vmul.f32 %v37, %v37
    %44 = vadd.xlane.f32.xlu0 %v43
    %v45 = vpop.xlane.xlu0 %44
    %v46 = vmax.f32 %v45, 1e-24
    %v47 = vrsqrt.pop %v46
    %v48 = vmul.f32 %v42, 14.285714
    %v49 = vmul.f32 %v36, %v48
    %v50 = vmul.f32 %v37, %v47
    %51 = vmatprep.subr.mxu0 0.0
    %52 = vmatpush1.xpose.msra.mxu0 0.0
    %53 = vmatprep.subr.mxu0 0.0
    %54 = vmatpush1.xpose.msra.mxu0 0.0
    %55 = vmatprep.subr.mxu0 0.0
    %56 = vmatpush1.xpose.msra.mxu0 0.0
    %57 = vmatprep.subr.mxu0 0.0
    %58 = vmatpush1.xpose.msra.mxu0 0.0
    %59 = vmatprep.subr.mxu0 0.0
    %60 = vmatpush1.xpose.msra.mxu0 0.0
    %61 = vmatprep.subr.mxu0 0.0
    %62 = vmatpush1.xpose.msra.mxu0 0.0
    %63 = vmatprep.subr.mxu0 0.0
    %64 = vmatpush1.xpose.msra.mxu0 0.0
    %65 = vmatprep.subr.mxu0 0.0
    %66 = vmatpush1.xpose.msra.mxu0 0.0
    %67 = vmatprep.subr.mxu0 0.0
    %68 = vmatpush1.xpose.msra.mxu0 0.0
    %69 = vmatprep.subr.mxu0 0.0
    %70 = vmatpush1.xpose.msra.mxu0 0.0
    %71 = vmatprep.subr.mxu0 0.0
    %72 = vmatpush1.xpose.msra.mxu0 0.0
    %73 = vmatprep.subr.mxu0 0.0
    %74 = vmatpush1.xpose.msra.mxu0 0.0
    %75 = vmatprep.subr.mxu0 0.0
    %76 = vmatpush1.xpose.msra.mxu0 0.0
    %77 = vmatprep.subr.mxu0 0.0
    %78 = vmatpush1.xpose.msra.mxu0 0.0
    %79 = vmatprep.subr.mxu0 0.0
    %80 = vmatpush1.xpose.msra.mxu0 0.0
    %81 = vmatprep.subr.mxu0 0.0
    %82 = vmatpush1.xpose.msra.mxu0 %v50
    %83 = vmatprep.subr.mxu0 0.0
    %84 = vmatpush2.xpose.msra.mxu0 0.0
    %85 = vmatprep.subr.mxu0 0.0
    %86 = vmatpush2.xpose.msra.mxu0 0.0
    %87 = vmatprep.subr.mxu0 0.0
    %88 = vmatpush2.xpose.msra.mxu0 0.0
    %89 = vmatprep.subr.mxu0 0.0
    %90 = vmatpush2.xpose.msra.mxu0 0.0
    %91 = vmatprep.subr.mxu0 0.0
    %92 = vmatpush2.xpose.msra.mxu0 0.0
    %93 = vmatprep.subr.mxu0 0.0
    %94 = vmatpush2.xpose.msra.mxu0 0.0
    %95 = vmatprep.subr.mxu0 0.0
    %96 = vmatpush2.xpose.msra.mxu0 0.0
    %97 = vmatprep.subr.mxu0 0.0
    %98 = vmatpush2.xpose.msra.mxu0 0.0
    %99 = vmatprep.subr.mxu0 0.0
    %100 = vmatpush2.xpose.msra.mxu0 0.0
    %101 = vmatprep.subr.mxu0 0.0
    %102 = vmatpush2.xpose.msra.mxu0 0.0
    %103 = vmatprep.subr.mxu0 0.0
    %104 = vmatpush2.xpose.msra.mxu0 0.0
    %105 = vmatprep.subr.mxu0 0.0
    %106 = vmatpush2.xpose.msra.mxu0 0.0
    %107 = vmatprep.subr.mxu0 0.0
    %108 = vmatpush2.xpose.msra.mxu0 0.0
    %109 = vmatprep.subr.mxu0 0.0
    %110 = vmatpush2.xpose.msra.mxu0 0.0
    %111 = vmatprep.subr.mxu0 0.0
    %112 = vmatpush2.xpose.msra.mxu0 0.0
    %113 = vmatprep.subr.mxu0 0.0
    %114 = vmatpush2.xpose.msra.mxu0 0.0
    %115 = vmatprep.mubr.f32.mxu0 0.0
    %116 = vmatmul.mubr.f32.gmra.mxu0 %v49
    %v117 = vpop.f32.mrf.mxu0
    %v118 = vadd.f32 0.0, %v117
    %v119 = vpop.f32.mrf.mxu0
    %120 = vdwg.mxu0
    %v121 = vmul.f32 %v49, %v50
    %122 = vadd.xlane.f32.xlu0 %v121
    %v123 = vpop.xlane.xlu0 %122
    %v124 = vrot.slane %v123, 4
    %v125 = vadd.f32 %v123, %v124
    %v126 = vrot.slane %v125, 2
    %v127 = vadd.f32 %v125, %v126
    %v128 = vrot.slane %v127, 1
    %v129 = vadd.f32 %v127, %v128
    %s130 = vtos %v129
    %vm131 = vcmask 64512
    %v132 = vsel %vm131, %v118, -inf
    %133 = vmax.xlane.f32.xlu0 %v132
    %v134 = vpop.xlane.xlu0 %133
    %v135 = vrot.slane %v134, 4
    %v136 = vmax.f32 %v134, %v135
    %v137 = vrot.slane %v136, 2
    %v138 = vmax.f32 %v136, %v137
    %v139 = vrot.slane %v138, 1
    %v140 = vmax.f32 %v138, %v139
    %s141 = vtos %v140
    %v142 = vstv %s141
    %v143 = vsub.f32 %v118, %v142
    %v144 = vmul.f32 %v143, 1.442695
    %v145 = vpow.pop %v144
    %v146 = vsel %vm131, %v145, 0.0
    %147 = vadd.xlane.f32.xlu0 %v146
    %v148 = vpop.xlane.xlu0 %147
    %v149 = vmax.f32 %v148, 1e-30
    %v150 = vlog2.pop %v149
    %v151 = vmul.f32 %v150, 0.6931472
    %v152 = vadd.f32 %v142, %v151
    %v153 = vrot.slane %v146, 4
    %v154 = vadd.f32 %v146, %v153
    %v155 = vrot.slane %v154, 2
    %v156 = vadd.f32 %v154, %v155
    %v157 = vrot.slane %v156, 1
    %v158 = vadd.f32 %v156, %v157
    %v159 = vmax.f32 %v158, 1e-30
    %v160 = vlog2.pop %v159
    %v161 = vmul.f32 %v160, 0.6931472
    %v162 = vadd.f32 %v142, %v161
    %vm163 = vcmask 7168
    %v164 = vsel %vm163, %v152, 0.0
    %165 = vadd.xlane.f32.xlu0 %v164
    %v166 = vpop.xlane.xlu0 %165
    %v167 = vrot.slane %v166, 4
    %v168 = vadd.f32 %v166, %v167
    %v169 = vrot.slane %v168, 2
    %v170 = vadd.f32 %v168, %v169
    %v171 = vrot.slane %v170, 1
    %v172 = vadd.f32 %v170, %v171
    %s173 = vtos %v172
    %s174 = ssub.f32 %s173, %s130
    %s175 = smul.f32 %s174, 0.125
    %vm176 = vcmask 57344
    %v177 = vsel %vm176, %v162, 0.0
    %178 = vadd.xlane.f32.xlu0 %v177
    %v179 = vpop.xlane.xlu0 %178
    %v180 = vrot.slane %v179, 4
    %v181 = vadd.f32 %v179, %v180
    %v182 = vrot.slane %v181, 2
    %v183 = vadd.f32 %v181, %v182
    %v184 = vrot.slane %v183, 1
    %v185 = vadd.f32 %v183, %v184
    %s186 = vtos %v185
    %s187 = ssub.f32 %s186, %s130
    %s188 = smul.f32 %s187, 0.125
    %s189 = sadd.f32 %s175, %s188
    %s190 = smul.f32 %s189, 0.5
    %s191 = scalar_lea.smem [#allocation7], 0
    %192 = sst [smem:[%s191]] %s190
    // Predicated region
    $region18: #{tpu_custom_call.1} parent=1 // pred_check
      _
    $region19: #{tpu_custom_call.1} parent=1 // pred_check_branch
      %194 = sbr.rel (0) target = $region21
    $region20: #{tpu_custom_call.1} parent=1 // pred_region
      %s196 = ssub.s32 16, 16
      %197 = vsyncadd [#allocation4], %s196
      %200 = dma.smem_to_hbm [#allocation7], 16, %s2, [#allocation4]
    $region21: #{tpu_custom_call.1} parent=1 // pred_fallthru
      _
    // Predicated region
    $region22: #{tpu_custom_call.1} parent=1 // pred_check
      _
    $region23: #{tpu_custom_call.1} parent=1 // pred_check_branch
      %202 = sbr.rel (0) target = $region25
    $region24: #{tpu_custom_call.1} parent=1 // pred_region
      %203 = dma.done [#allocation4], 16
    $region25: #{tpu_custom_call.1} parent=1 // pred_fallthru
      _
    %204 = sfence
    %205 = vsyncpa [#allocation3], 1
    %206 = vsyncpa [#allocation6], 1
    %207 = vsyncpa [#allocation4], 1

</llo_original>
